<compile_context>
chip_gen: v7x
topology: tpu7x:2x2x1
jax: 0.10.0
libtpu: 0.0.40
codegen_flags: <defaults>
</compile_context>

<pallas_src>
import functools
import math

import jax
import jax.numpy as jnp
from jax.experimental import pallas as pl
from jax.experimental.pallas import tpu as pltpu


def _erf(x):
    # Abramowitz & Stegun 7.1.26, max abs error ~1.5e-7.
    # Only exp (EUP slot) + VPU arithmetic -> always lowers in Mosaic.
    a1 = 0.254829592
    a2 = -0.284496736
    a3 = 1.421413741
    a4 = -1.453152027
    a5 = 1.061405429
    p = 0.3275911
    sgn = jnp.where(x >= 0.0, 1.0, -1.0)
    ax = jnp.abs(x)
    t = 1.0 / (1.0 + p * ax)
    poly = ((((a5 * t + a4) * t + a3) * t + a2) * t + a1) * t
    return sgn * (1.0 - poly * jnp.exp(-ax * ax))


def _gelu(x):
    # x * 0.5 * (1 + erf(x / sqrt(2)))  -- matches the PyTorch module's gelu
    return x * 0.5 * (1.0 + _erf(x * (1.0 / math.sqrt(2.0))))


def intermediate_kernel(x_ref, w1_ref, b1_ref, w2_ref, b2_ref, g_ref, beta_ref,
                        o_ref, *, eps):
    # x_ref: (block_m, H) row tile; weights full-resident in VMEM.
    x = x_ref[...].astype(jnp.float32)

    # dense_1: (block_m, H) @ (H, 4H) on the MXU (weights already (in, out))
    h = jnp.dot(x, w1_ref[...], preferred_element_type=jnp.float32)
    h = h + b1_ref[...]
    h = _gelu(h)

    # dense_2: (block_m, 4H) @ (4H, H)
    y = jnp.dot(h, w2_ref[...], preferred_element_type=jnp.float32)
    y = y + b2_ref[...]

    # TODO(synk): dropout is identity here (inference/eval mode); training-mode
    # dropout would use pltpu.prng_seed / pltpu.prng_random_bits in-kernel.

    # residual + LayerNorm (eps = 1e-12); rsqrt runs on the otherwise-idle EUP.
    y = y + x
    u = jnp.mean(y, axis=-1, keepdims=True)
    c = y - u
    s = jnp.mean(c * c, axis=-1, keepdims=True)
    yn = c * jax.lax.rsqrt(s + eps)
    o_ref[...] = (g_ref[...] * yn + beta_ref[...]).astype(o_ref.dtype)


def intermediate_forward(x, w1, b1, w2, b2, gamma, beta, *, eps=1e-12,
                         block_m=128):
    """x: (..., H); w1: (H, 4H); w2: (4H, H); biases/gamma/beta: 1-D."""
    orig_shape = x.shape
    hidden = x.shape[-1]
    inter = w1.shape[-1]
    x2 = x.reshape(-1, hidden)
    m = x2.shape[0]

    # Pad the row axis so every grid step gets a full (block_m, H) tile.
    block_m = min(block_m, max(m, 1))
    m_pad = pl.cdiv(m, block_m) * block_m
    if m_pad != m:
        x2 = jnp.pad(x2, ((0, m_pad - m), (0, 0)))

    b1_2 = b1.reshape(1, inter)
    b2_2 = b2.reshape(1, hidden)
    g_2 = gamma.reshape(1, hidden)
    be_2 = beta.reshape(1, hidden)

    out = pl.pallas_call(
        functools.partial(intermediate_kernel, eps=eps),
        out_shape=jax.ShapeDtypeStruct((m_pad, hidden), x.dtype),
        grid_spec=pltpu.PrefetchScalarGridSpec(
            num_scalar_prefetch=0,
            grid=(m_pad // block_m,),
            in_specs=[
                pl.BlockSpec((block_m, hidden), lambda i: (i, 0)),
                pl.BlockSpec((hidden, inter), lambda i: (0, 0)),
                pl.BlockSpec((1, inter), lambda i: (0, 0)),
                pl.BlockSpec((inter, hidden), lambda i: (0, 0)),
                pl.BlockSpec((1, hidden), lambda i: (0, 0)),
                pl.BlockSpec((1, hidden), lambda i: (0, 0)),
                pl.BlockSpec((1, hidden), lambda i: (0, 0)),
            ],
            out_specs=pl.BlockSpec((block_m, hidden), lambda i: (i, 0)),
        ),
        compiler_params=pltpu.CompilerParams(
            dimension_semantics=("parallel",),
            vmem_limit_bytes=100 * 1024 * 1024,
        ),
    )(x2, w1, b1_2, w2, b2_2, g_2, be_2)

    if m_pad != m:
        out = out[:m]
    return out.reshape(orig_shape)


def intermediate_ref(x, w1, b1, w2, b2, gamma, beta, eps=1e-12):
    # Pure-JAX reference mirroring the PyTorch module (eval mode).
    hp = jax.lax.Precision.HIGHEST
    h = jnp.dot(x, w1, precision=hp) + b1
    h = h * 0.5 * (1.0 + jax.lax.erf(h / math.sqrt(2.0)))
    y = jnp.dot(h, w2, precision=hp) + b2
    y = y + x
    u = jnp.mean(y, axis=-1, keepdims=True)
    s = jnp.mean((y - u) ** 2, axis=-1, keepdims=True)
    yn = (y - u) / jnp.sqrt(s + eps)
    return gamma * yn + beta


if __name__ == "__main__":
    key = jax.random.PRNGKey(0)
    kx, k1, k2, k3, k4 = jax.random.split(key, 5)
    B, S, H = 2, 8, 32          # batch=2, seq=8, hidden=32 -> intermediate=128
    x = jax.random.normal(kx, (B, S, H), dtype=jnp.float32)
    w1 = jax.random.normal(k1, (H, 4 * H), dtype=jnp.float32) * 0.05
    b1 = jax.random.normal(k2, (4 * H,), dtype=jnp.float32) * 0.05
    w2 = jax.random.normal(k3, (4 * H, H), dtype=jnp.float32) * 0.05
    b2 = jax.random.normal(k4, (H,), dtype=jnp.float32) * 0.05
    gamma = jnp.ones((H,), jnp.float32)
    beta = jnp.zeros((H,), jnp.float32)

    out = intermediate_forward(x, w1, b1, w2, b2, gamma, beta, block_m=8)
    out = jax.block_until_ready(out)

    ref = intermediate_ref(x, w1, b1, w2, b2, gamma, beta)
    assert out.shape == ref.shape
    max_err = float(jnp.max(jnp.abs(out - ref)))
    assert jnp.allclose(out, ref, rtol=1e-4, atol=1e-4), max_err

    print("KERNEL_OK")
</pallas_src>

<mosaic_0001>
module attributes {stable_mosaic.version = 11 : i64} {
  func.func @intermediate_kernel(%arg0: i32, %arg1: memref<8x32xf32, #tpu.memory_space<vmem>>, %arg2: memref<32x128xf32, #tpu.memory_space<vmem>>, %arg3: memref<1x128xf32, #tpu.memory_space<vmem>>, %arg4: memref<128x32xf32, #tpu.memory_space<vmem>>, %arg5: memref<1x32xf32, #tpu.memory_space<vmem>>, %arg6: memref<1x32xf32, #tpu.memory_space<vmem>>, %arg7: memref<1x32xf32, #tpu.memory_space<vmem>>, %arg8: memref<8x32xf32, #tpu.memory_space<vmem>>) attributes {dimension_semantics = [#tpu.dimension_semantics<parallel>], iteration_bounds = array<i64: 2>, scalar_prefetch = 0 : i64, scratch_operands = 0 : i64, tpu.core_type = #tpu.core_type<tc>, window_params = [{transform_indices = @transform_0, window_bounds = array<i64: 8, 32>}, {pipeline_mode = #tpu.pipeline_mode<synchronous>, transform_indices = @transform_1, window_bounds = array<i64: 32, 128>}, {pipeline_mode = #tpu.pipeline_mode<synchronous>, transform_indices = @transform_2, window_bounds = array<i64: 1, 128>}, {pipeline_mode = #tpu.pipeline_mode<synchronous>, transform_indices = @transform_3, window_bounds = array<i64: 128, 32>}, {pipeline_mode = #tpu.pipeline_mode<synchronous>, transform_indices = @transform_4, window_bounds = array<i64: 1, 32>}, {pipeline_mode = #tpu.pipeline_mode<synchronous>, transform_indices = @transform_5, window_bounds = array<i64: 1, 32>}, {pipeline_mode = #tpu.pipeline_mode<synchronous>, transform_indices = @transform_6, window_bounds = array<i64: 1, 32>}, {transform_indices = @transform_7, window_bounds = array<i64: 8, 32>}]} {
    %c0 = arith.constant 0 : index
    %c0_0 = arith.constant 0 : index
    %0 = vector.load %arg1[%c0, %c0_0] : memref<8x32xf32, #tpu.memory_space<vmem>>, vector<8x32xf32>
    %c0_1 = arith.constant 0 : index
    %c0_2 = arith.constant 0 : index
    %1 = vector.load %arg2[%c0_1, %c0_2] : memref<32x128xf32, #tpu.memory_space<vmem>>, vector<32x128xf32>
    %cst = arith.constant dense<0.000000e+00> : vector<8x128xf32>
    %2 = tpu.matmul %0, %1, %cst {dimension_numbers = #tpu.dot_dimension_numbers<[1], [0], [0], [1], [0, 0, 1, 1], [], []>} : vector<8x32xf32>, vector<32x128xf32>, vector<8x128xf32> -> vector<8x128xf32>
    %c0_3 = arith.constant 0 : index
    %c0_4 = arith.constant 0 : index
    %3 = vector.load %arg3[%c0_3, %c0_4] : memref<1x128xf32, #tpu.memory_space<vmem>>, vector<1x128xf32>
    %4 = vector.broadcast %3 : vector<1x128xf32> to vector<8x128xf32>
    %5 = arith.addf %2, %4 : vector<8x128xf32>
    %cst_5 = arith.constant 5.000000e-01 : f32
    %6 = vector.broadcast %cst_5 : f32 to vector<8x128xf32>
    %7 = arith.mulf %5, %6 : vector<8x128xf32>
    %cst_6 = arith.constant 0.707106769 : f32
    %8 = vector.broadcast %cst_6 : f32 to vector<8x128xf32>
    %9 = arith.mulf %5, %8 : vector<8x128xf32>
    %cst_7 = arith.constant 0.000000e+00 : f32
    %10 = vector.broadcast %cst_7 : f32 to vector<8x128xf32>
    %11 = arith.cmpf oge, %9, %10 : vector<8x128xf32>
    %cst_8 = arith.constant 1.000000e+00 : f32
    %cst_9 = arith.constant -1.000000e+00 : f32
    %12 = vector.broadcast %cst_8 : f32 to vector<8x128xf32>
    %13 = vector.broadcast %cst_9 : f32 to vector<8x128xf32>
    %14 = arith.select %11, %12, %13 : vector<8x128xi1>, vector<8x128xf32>
    %15 = math.absf %9 : vector<8x128xf32>
    %cst_10 = arith.constant 0.327591091 : f32
    %16 = vector.broadcast %cst_10 : f32 to vector<8x128xf32>
    %17 = arith.mulf %16, %15 : vector<8x128xf32>
    %cst_11 = arith.constant 1.000000e+00 : f32
    %18 = vector.broadcast %cst_11 : f32 to vector<8x128xf32>
    %19 = arith.addf %18, %17 : vector<8x128xf32>
    %cst_12 = arith.constant 1.000000e+00 : f32
    %20 = vector.broadcast %cst_12 : f32 to vector<8x128xf32>
    %21 = arith.divf %20, %19 : vector<8x128xf32>
    %cst_13 = arith.constant 1.06140542 : f32
    %22 = vector.broadcast %cst_13 : f32 to vector<8x128xf32>
    %23 = arith.mulf %22, %21 : vector<8x128xf32>
    %cst_14 = arith.constant -1.45315206 : f32
    %24 = vector.broadcast %cst_14 : f32 to vector<8x128xf32>
    %25 = arith.addf %23, %24 : vector<8x128xf32>
    %26 = arith.mulf %25, %21 : vector<8x128xf32>
    %cst_15 = arith.constant 1.42141378 : f32
    %27 = vector.broadcast %cst_15 : f32 to vector<8x128xf32>
    %28 = arith.addf %26, %27 : vector<8x128xf32>
    %29 = arith.mulf %28, %21 : vector<8x128xf32>
    %cst_16 = arith.constant -0.284496725 : f32
    %30 = vector.broadcast %cst_16 : f32 to vector<8x128xf32>
    %31 = arith.addf %29, %30 : vector<8x128xf32>
    %32 = arith.mulf %31, %21 : vector<8x128xf32>
    %cst_17 = arith.constant 0.254829586 : f32
    %33 = vector.broadcast %cst_17 : f32 to vector<8x128xf32>
    %34 = arith.addf %32, %33 : vector<8x128xf32>
    %35 = arith.mulf %34, %21 : vector<8x128xf32>
    %cst_18 = arith.constant 0.000000e+00 : f32
    %36 = vector.broadcast %cst_18 : f32 to vector<8x128xf32>
    %37 = arith.subf %36, %15 : vector<8x128xf32>
    %38 = arith.mulf %37, %15 : vector<8x128xf32>
    %39 = math.exp %38 : vector<8x128xf32>
    %40 = arith.mulf %35, %39 : vector<8x128xf32>
    %cst_19 = arith.constant 1.000000e+00 : f32
    %41 = vector.broadcast %cst_19 : f32 to vector<8x128xf32>
    %42 = arith.subf %41, %40 : vector<8x128xf32>
    %43 = arith.mulf %14, %42 : vector<8x128xf32>
    %cst_20 = arith.constant 1.000000e+00 : f32
    %44 = vector.broadcast %cst_20 : f32 to vector<8x128xf32>
    %45 = arith.addf %44, %43 : vector<8x128xf32>
    %46 = arith.mulf %7, %45 : vector<8x128xf32>
    %c0_21 = arith.constant 0 : index
    %c0_22 = arith.constant 0 : index
    %47 = vector.load %arg4[%c0_21, %c0_22] : memref<128x32xf32, #tpu.memory_space<vmem>>, vector<128x32xf32>
    %cst_23 = arith.constant dense<0.000000e+00> : vector<8x32xf32>
    %48 = tpu.matmul %46, %47, %cst_23 {dimension_numbers = #tpu.dot_dimension_numbers<[1], [0], [0], [1], [0, 0, 1, 1], [], []>} : vector<8x128xf32>, vector<128x32xf32>, vector<8x32xf32> -> vector<8x32xf32>
    %c0_24 = arith.constant 0 : index
    %c0_25 = arith.constant 0 : index
    %49 = vector.load %arg5[%c0_24, %c0_25] : memref<1x32xf32, #tpu.memory_space<vmem>>, vector<1x32xf32>
    %50 = vector.broadcast %49 : vector<1x32xf32> to vector<8x32xf32>
    %51 = arith.addf %48, %50 : vector<8x32xf32>
    %52 = arith.addf %51, %0 : vector<8x32xf32>
    %cst_26 = arith.constant dense<0.000000e+00> : vector<8xf32>
    %53 = vector.multi_reduction <add>, %52, %cst_26 [1] : vector<8x32xf32> to vector<8xf32>
    %54 = vector.shape_cast %53 : vector<8xf32> to vector<8x1xf32>
    %cst_27 = arith.constant 3.200000e+01 : f32
    %55 = vector.broadcast %cst_27 : f32 to vector<8x1xf32>
    %56 = arith.divf %54, %55 : vector<8x1xf32>
    %57 = vector.broadcast %56 : vector<8x1xf32> to vector<8x32xf32>
    %58 = arith.subf %52, %57 : vector<8x32xf32>
    %59 = arith.mulf %58, %58 : vector<8x32xf32>
    %cst_28 = arith.constant dense<0.000000e+00> : vector<8xf32>
    %60 = vector.multi_reduction <add>, %59, %cst_28 [1] : vector<8x32xf32> to vector<8xf32>
    %61 = vector.shape_cast %60 : vector<8xf32> to vector<8x1xf32>
    %cst_29 = arith.constant 3.200000e+01 : f32
    %62 = vector.broadcast %cst_29 : f32 to vector<8x1xf32>
    %63 = arith.divf %61, %62 : vector<8x1xf32>
    %cst_30 = arith.constant 9.99999996E-13 : f32
    %64 = vector.broadcast %cst_30 : f32 to vector<8x1xf32>
    %65 = arith.addf %63, %64 : vector<8x1xf32>
    %66 = math.rsqrt %65 : vector<8x1xf32>
    %67 = vector.broadcast %66 : vector<8x1xf32> to vector<8x32xf32>
    %68 = arith.mulf %58, %67 : vector<8x32xf32>
    %c0_31 = arith.constant 0 : index
    %c0_32 = arith.constant 0 : index
    %69 = vector.load %arg6[%c0_31, %c0_32] : memref<1x32xf32, #tpu.memory_space<vmem>>, vector<1x32xf32>
    %70 = vector.broadcast %69 : vector<1x32xf32> to vector<8x32xf32>
    %71 = arith.mulf %70, %68 : vector<8x32xf32>
    %c0_33 = arith.constant 0 : index
    %c0_34 = arith.constant 0 : index
    %72 = vector.load %arg7[%c0_33, %c0_34] : memref<1x32xf32, #tpu.memory_space<vmem>>, vector<1x32xf32>
    %73 = vector.broadcast %72 : vector<1x32xf32> to vector<8x32xf32>
    %74 = arith.addf %71, %73 : vector<8x32xf32>
    %c0_35 = arith.constant 0 : index
    %c0_36 = arith.constant 0 : index
    %75 = vector.load %arg8[%c0_35, %c0_36] : memref<8x32xf32, #tpu.memory_space<vmem>>, vector<8x32xf32>
    tpu.vector_store %arg8[%c0_35, %c0_36], %74 {strides = array<i32>} : memref<8x32xf32, #tpu.memory_space<vmem>>, vector<8x32xf32>,
    return
  }
  func.func @transform_0(%arg0: i32) -> (i32, i32) {
    %c0_i32 = arith.constant 0 : i32
    %c0_i32_0 = arith.constant 0 : i32
    return %arg0, %c0_i32 : i32, i32
  }
  func.func @transform_1(%arg0: i32) -> (i32, i32) {
    %c0_i32 = arith.constant 0 : i32
    %c0_i32_0 = arith.constant 0 : i32
    %c0_i32_1 = arith.constant 0 : i32
    return %c0_i32, %c0_i32_0 : i32, i32
  }
  func.func @transform_2(%arg0: i32) -> (i32, i32) {
    %c0_i32 = arith.constant 0 : i32
    %c0_i32_0 = arith.constant 0 : i32
    %c0_i32_1 = arith.constant 0 : i32
    return %c0_i32, %c0_i32_0 : i32, i32
  }
  func.func @transform_3(%arg0: i32) -> (i32, i32) {
    %c0_i32 = arith.constant 0 : i32
    %c0_i32_0 = arith.constant 0 : i32
    %c0_i32_1 = arith.constant 0 : i32
    return %c0_i32, %c0_i32_0 : i32, i32
  }
  func.func @transform_4(%arg0: i32) -> (i32, i32) {
    %c0_i32 = arith.constant 0 : i32
    %c0_i32_0 = arith.constant 0 : i32
    %c0_i32_1 = arith.constant 0 : i32
    return %c0_i32, %c0_i32_0 : i32, i32
  }
  func.func @transform_5(%arg0: i32) -> (i32, i32) {
    %c0_i32 = arith.constant 0 : i32
    %c0_i32_0 = arith.constant 0 : i32
    %c0_i32_1 = arith.constant 0 : i32
    return %c0_i32, %c0_i32_0 : i32, i32
  }
  func.func @transform_6(%arg0: i32) -> (i32, i32) {
    %c0_i32 = arith.constant 0 : i32
    %c0_i32_0 = arith.constant 0 : i32
    %c0_i32_1 = arith.constant 0 : i32
    return %c0_i32, %c0_i32_0 : i32, i32
  }
  func.func @transform_7(%arg0: i32) -> (i32, i32) {
    %c0_i32 = arith.constant 0 : i32
    %c0_i32_0 = arith.constant 0 : i32
    return %arg0, %c0_i32 : i32, i32
  }
}

</mosaic_0001>

<llo_original>
// kernel: tpu_custom_call.1
$region0: #{tpu_custom_call.1}
  #allocation0 [shape = 'u32[]', space=smem, size = 0x4, offset = 0x4, fixed_abs, tag = 'smem constant byte address 0x4 - core index']
  #allocation1 [shape = 'u32[144,128]{1,0:T(1,128)}', space=vmem, size = 0x12000, scoped, tag = 'internal scratch']
  %s0 = inlined_call_operand.hbm [shape: f32[16,32], index: 0, kind: input, shape index: {}]
  %s1 = inlined_call_operand.hbm [shape: f32[32,128], index: 1, kind: input, shape index: {}]
  %s2 = inlined_call_operand.hbm [shape: f32[1,128], index: 2, kind: input, shape index: {}]
  %s3 = inlined_call_operand.hbm [shape: f32[128,32], index: 3, kind: input, shape index: {}]
  %s4 = inlined_call_operand.hbm [shape: f32[1,32], index: 4, kind: input, shape index: {}]
  %s5 = inlined_call_operand.hbm [shape: f32[1,32], index: 5, kind: input, shape index: {}]
  %s6 = inlined_call_operand.hbm [shape: f32[1,32], index: 6, kind: input, shape index: {}]
  %s7 = inlined_call_operand.hbm [shape: f32[16,32], index: 7, kind: output, shape index: {}]
  %s8 = sld [smem:[#allocation0]]
  $region89: #{tpu_custom_call.1} parent=0
    _
  %s10 = ssub.s32 1, %s8
  %s11 = scalar_select 0, %s10, %s8
  $region1: #{tpu_custom_call.1} parent=0
    #allocation2 [shape = 'u8[8192]{0}', space=vmem, size = 0x2000, scoped, tag = 'input window, operand 0']
    #allocation3 [shape = 's32[2]{0}', space=sflag, size = 0x8, scoped, tag = 'scoped memory for tpu_custom_call.1']
    #allocation4 [shape = 's32[2]{0}', space=sflag, size = 0x8, scoped, tag = 'scoped memory for tpu_custom_call.1']
    #allocation5 [shape = 'u8[16384]{0}', space=vmem, size = 0x4000, scoped, tag = 'input window, operand 1, single buffered']
    #allocation6 [shape = 's32[1]{0}', space=sflag, size = 0x4, scoped, tag = 'scoped memory for tpu_custom_call.1']
    #allocation7 [shape = 'u8[512]{0}', space=vmem, size = 0x400, scoped, tag = 'input window, operand 2, single buffered']
    #allocation8 [shape = 'u8[65536]{0}', space=vmem, size = 0x10000, scoped, tag = 'input window, operand 3, single buffered']
    #allocation9 [shape = 's32[1]{0}', space=sflag, size = 0x4, scoped, tag = 'scoped memory for tpu_custom_call.1']
    #allocation10 [shape = 'u8[512]{0}', space=vmem, size = 0x400, scoped, tag = 'input window, operand 4, single buffered']
    #allocation11 [shape = 'u8[512]{0}', space=vmem, size = 0x400, scoped, tag = 'input window, operand 5, single buffered']
    #allocation12 [shape = 's32[1]{0}', space=sflag, size = 0x4, scoped, tag = 'scoped memory for tpu_custom_call.1']
    #allocation13 [shape = 'u8[512]{0}', space=vmem, size = 0x400, scoped, tag = 'input window, operand 6, single buffered']
    #allocation14 [shape = 'u8[8192]{0}', space=vmem, size = 0x2000, scoped, tag = 'output window, operand 0']
    %12 = vsyncpa [#allocation3], 0
    %s13 = scalar_lea.sflag [#allocation3], 1
    %14 = vsyncpa %s13, 0
    %15 = vsyncpa [#allocation6], 0
    %16 = vsyncpa [#allocation9], 0
    %17 = vsyncpa [#allocation12], 0
    %18 = vsyncpa [#allocation4], 0
    %s19 = scalar_lea.sflag [#allocation4], 1
    %20 = vsyncpa %s19, 0
    loop: start=0, step=1, limit=4
    $region2: #{tpu_custom_call.1} parent=1 // loop_pre_header
      _
    $region3: #{tpu_custom_call.1} parent=1 // loop_header
      %s22 = sphi 0, %s26
      %p23 = scmp.ge.s32.totalorder %s22, 4
      %s32 = sphi 0, %s34
      %s35 = sphi 0, %s32
      %s36 = sphi 0, %s35
      %s52 = sphi 0, %s36
      %s56 = sphi 0, %s56
      %s58 = sphi 0, %s56
      %s59 = sphi 0, %s58
      %s73 = sphi 0, %s59
      %s77 = sphi 0, %s77
      %s79 = sphi 0, %s77
      %s80 = sphi 0, %s79
      %s94 = sphi 0, %s80
      %s98 = sphi 0, %s98
      %s100 = sphi 0, %s98
      %s101 = sphi 0, %s100
      %s115 = sphi 0, %s101
      %s119 = sphi 0, %s119
      %s121 = sphi 0, %s119
      %s122 = sphi 0, %s121
      %s136 = sphi 0, %s122
      %s140 = sphi 0, %s140
      %s142 = sphi 0, %s140
      %s143 = sphi 0, %s142
      %s157 = sphi 0, %s143
      %s161 = sphi 0, %s161
      %s163 = sphi 0, %s161
      %s164 = sphi 0, %s163
      %s178 = sphi 0, %s164
      %s184 = sphi 0, %s186
      %s187 = sphi 0, %s184
      %s188 = sphi 0, %s187
      %s204 = sphi 0, %s188
    $region4: #{tpu_custom_call.1} parent=1 // loop_header_branch
      %25 = sbr.rel (%p23) target = $region8
    $region5: #{tpu_custom_call.1} parent=1 // loop_body
      %s27 = ssub.s32 %s22, 1
      %s28 = ssub.s32 %s22, 2
      %s29 = sadd.s32 %s22, 1
      %s30 = ssub.s32 %s22, %s29
      %p31 = scmp.eq.s32.totalorder %s30, 0
      %s33 = sadd.s32 %s32, 1
      %s34 = scalar_select %p31, %s32, %s33
      %p37 = pneg %p31
      %p38 = scmp.eq.s32.totalorder %s22, 1
      %p39 = por %p37, %p38
      %p40 = scmp.ne.s32.totalorder %s32, %s35
      %p41 = scmp.eq.s32.totalorder %s22, 0
      %p42 = por %p40, %p41
      %p43 = scmp.ne.s32.totalorder %s32, %s35
      %p44 = scmp.eq.s32.totalorder %s27, 1
      %p45 = por %p43, %p44
      %p46 = scmp.ne.s32.totalorder %s35, %s36
      %p47 = scmp.eq.s32.totalorder %s27, 0
      %p48 = por %p46, %p47
      %p49 = scmp.ne.s32.totalorder %s35, %s36
      %p50 = scmp.eq.s32.totalorder %s28, 1
      %p51 = por %p49, %p50
      %p53 = scmp.ne.s32.totalorder %s36, %s52
      %p54 = scmp.eq.s32.totalorder %s28, 0
      %p55 = por %p53, %p54
      %s57 = sadd.s32 %s56, 1
      %p60 = scmp.eq.s32.totalorder %s22, 1
      %p61 = scmp.ne.s32.totalorder %s56, %s58
      %p62 = scmp.eq.s32.totalorder %s22, 0
      %p63 = por %p61, %p62
      %p64 = scmp.ne.s32.totalorder %s56, %s58
      %p65 = scmp.eq.s32.totalorder %s27, 1
      %p66 = por %p64, %p65
      %p67 = scmp.ne.s32.totalorder %s58, %s59
      %p68 = scmp.eq.s32.totalorder %s27, 0
      %p69 = por %p67, %p68
      %p70 = scmp.ne.s32.totalorder %s58, %s59
      %p71 = scmp.eq.s32.totalorder %s28, 1
      %p72 = por %p70, %p71
      %p74 = scmp.ne.s32.totalorder %s59, %s73
      %p75 = scmp.eq.s32.totalorder %s28, 0
      %p76 = por %p74, %p75
      %s78 = sadd.s32 %s77, 1
      %p81 = scmp.eq.s32.totalorder %s22, 1
      %p82 = scmp.ne.s32.totalorder %s77, %s79
      %p83 = scmp.eq.s32.totalorder %s22, 0
      %p84 = por %p82, %p83
      %p85 = scmp.ne.s32.totalorder %s77, %s79
      %p86 = scmp.eq.s32.totalorder %s27, 1
      %p87 = por %p85, %p86
      %p88 = scmp.ne.s32.totalorder %s79, %s80
      %p89 = scmp.eq.s32.totalorder %s27, 0
      %p90 = por %p88, %p89
      %p91 = scmp.ne.s32.totalorder %s79, %s80
      %p92 = scmp.eq.s32.totalorder %s28, 1
      %p93 = por %p91, %p92
      %p95 = scmp.ne.s32.totalorder %s80, %s94
      %p96 = scmp.eq.s32.totalorder %s28, 0
      %p97 = por %p95, %p96
      %s99 = sadd.s32 %s98, 1
      %p102 = scmp.eq.s32.totalorder %s22, 1
      %p103 = scmp.ne.s32.totalorder %s98, %s100
      %p104 = scmp.eq.s32.totalorder %s22, 0
      %p105 = por %p103, %p104
      %p106 = scmp.ne.s32.totalorder %s98, %s100
      %p107 = scmp.eq.s32.totalorder %s27, 1
      %p108 = por %p106, %p107
      %p109 = scmp.ne.s32.totalorder %s100, %s101
      %p110 = scmp.eq.s32.totalorder %s27, 0
      %p111 = por %p109, %p110
      %p112 = scmp.ne.s32.totalorder %s100, %s101
      %p113 = scmp.eq.s32.totalorder %s28, 1
      %p114 = por %p112, %p113
      %p116 = scmp.ne.s32.totalorder %s101, %s115
      %p117 = scmp.eq.s32.totalorder %s28, 0
      %p118 = por %p116, %p117
      %s120 = sadd.s32 %s119, 1
      %p123 = scmp.eq.s32.totalorder %s22, 1
      %p124 = scmp.ne.s32.totalorder %s119, %s121
      %p125 = scmp.eq.s32.totalorder %s22, 0
      %p126 = por %p124, %p125
      %p127 = scmp.ne.s32.totalorder %s119, %s121
      %p128 = scmp.eq.s32.totalorder %s27, 1
      %p129 = por %p127, %p128
      %p130 = scmp.ne.s32.totalorder %s121, %s122
      %p131 = scmp.eq.s32.totalorder %s27, 0
      %p132 = por %p130, %p131
      %p133 = scmp.ne.s32.totalorder %s121, %s122
      %p134 = scmp.eq.s32.totalorder %s28, 1
      %p135 = por %p133, %p134
      %p137 = scmp.ne.s32.totalorder %s122, %s136
      %p138 = scmp.eq.s32.totalorder %s28, 0
      %p139 = por %p137, %p138
      %s141 = sadd.s32 %s140, 1
      %p144 = scmp.eq.s32.totalorder %s22, 1
      %p145 = scmp.ne.s32.totalorder %s140, %s142
      %p146 = scmp.eq.s32.totalorder %s22, 0
      %p147 = por %p145, %p146
      %p148 = scmp.ne.s32.totalorder %s140, %s142
      %p149 = scmp.eq.s32.totalorder %s27, 1
      %p150 = por %p148, %p149
      %p151 = scmp.ne.s32.totalorder %s142, %s143
      %p152 = scmp.eq.s32.totalorder %s27, 0
      %p153 = por %p151, %p152
      %p154 = scmp.ne.s32.totalorder %s142, %s143
      %p155 = scmp.eq.s32.totalorder %s28, 1
      %p156 = por %p154, %p155
      %p158 = scmp.ne.s32.totalorder %s143, %s157
      %p159 = scmp.eq.s32.totalorder %s28, 0
      %p160 = por %p158, %p159
      %s162 = sadd.s32 %s161, 1
      %p165 = scmp.eq.s32.totalorder %s22, 1
      %p166 = scmp.ne.s32.totalorder %s161, %s163
      %p167 = scmp.eq.s32.totalorder %s22, 0
      %p168 = por %p166, %p167
      %p169 = scmp.ne.s32.totalorder %s161, %s163
      %p170 = scmp.eq.s32.totalorder %s27, 1
      %p171 = por %p169, %p170
      %p172 = scmp.ne.s32.totalorder %s163, %s164
      %p173 = scmp.eq.s32.totalorder %s27, 0
      %p174 = por %p172, %p173
      %p175 = scmp.ne.s32.totalorder %s163, %s164
      %p176 = scmp.eq.s32.totalorder %s28, 1
      %p177 = por %p175, %p176
      %p179 = scmp.ne.s32.totalorder %s164, %s178
      %p180 = scmp.eq.s32.totalorder %s28, 0
      %p181 = por %p179, %p180
      %s182 = ssub.s32 %s22, %s29
      %p183 = scmp.eq.s32.totalorder %s182, 0
      %s185 = sadd.s32 %s184, 1
      %s186 = scalar_select %p183, %s184, %s185
      %p189 = pneg %p183
      %p190 = scmp.eq.s32.totalorder %s22, 1
      %p191 = por %p189, %p190
      %p192 = scmp.ne.s32.totalorder %s184, %s187
      %p193 = scmp.eq.s32.totalorder %s22, 0
      %p194 = por %p192, %p193
      %p195 = scmp.ne.s32.totalorder %s184, %s187
      %p196 = scmp.eq.s32.totalorder %s27, 1
      %p197 = por %p195, %p196
      %p198 = scmp.ne.s32.totalorder %s187, %s188
      %p199 = scmp.eq.s32.totalorder %s27, 0
      %p200 = por %p198, %p199
      %p201 = scmp.ne.s32.totalorder %s187, %s188
      %p202 = scmp.eq.s32.totalorder %s28, 1
      %p203 = por %p201, %p202
      %p205 = scmp.ne.s32.totalorder %s188, %s204
      %p206 = scmp.eq.s32.totalorder %s28, 0
      %p207 = por %p205, %p206
      %p208 = scmp.le.s32.totalorder 1, %s22
      %p209 = scmp.lt.s32.totalorder %s22, 3
      %p210 = pnand %p208, %p209
      %p211 = pneg %p210
      // Predicated region
      $region9: #{tpu_custom_call.1} parent=5 // pred_check
        _
      $region10: #{tpu_custom_call.1} parent=5 // pred_check_branch
        %213 = sbr.rel (%p210) target = $region12
      $region11: #{tpu_custom_call.1} parent=5 // pred_region
        %s214 = ssub.s32 %s22, 1
        // Predicated region
        $region13: #{tpu_custom_call.1} parent=11 // pred_check
          %p215 = pneg %p69
        $region14: #{tpu_custom_call.1} parent=11 // pred_check_branch
          %217 = sbr.rel (%p215) target = $region16
        $region15: #{tpu_custom_call.1} parent=11 // pred_region
          %s219 = ssub.s32 512, 512
          %220 = vsyncadd [#allocation6], %s219
          %s221 = sshll.u32 [#allocation5], 4
          %s222 = int_to_ptr.vmem [resolvable:$true] %s221
          %227 = dma.hbm_to_vmem [thread:$0]  %s1, 512, %s222, [#allocation6], 128, 128, 8
        $region16: #{tpu_custom_call.1} parent=11 // pred_fallthru
          _
        // Predicated region
        $region17: #{tpu_custom_call.1} parent=11 // pred_check
          %p228 = pneg %p90
        $region18: #{tpu_custom_call.1} parent=11 // pred_check_branch
          %230 = sbr.rel (%p228) target = $region20
        $region19: #{tpu_custom_call.1} parent=11 // pred_region
          %s232 = ssub.s32 16, 16
          %233 = vsyncadd [#allocation6], %s232
          %s235 = sshll.u32 [#allocation7], 4
          %s236 = int_to_ptr.vmem [resolvable:$true] %s235
          %238 = dma.hbm_to_vmem [thread:$0]  %s2, 16, %s236, [#allocation6]
        $region20: #{tpu_custom_call.1} parent=11 // pred_fallthru
          _
        // Predicated region
        $region21: #{tpu_custom_call.1} parent=11 // pred_check
          %p239 = pneg %p111
        $region22: #{tpu_custom_call.1} parent=11 // pred_check_branch
          %241 = sbr.rel (%p239) target = $region24
        $region23: #{tpu_custom_call.1} parent=11 // pred_region
          %s243 = ssub.s32 2048, 2048
          %244 = vsyncadd [#allocation9], %s243
          %s245 = sshll.u32 [#allocation8], 4
          %s246 = int_to_ptr.vmem [resolvable:$true] %s245
          %251 = dma.hbm_to_vmem [thread:$0]  %s3, 2048, %s246, [#allocation9], 128, 128, 8
        $region24: #{tpu_custom_call.1} parent=11 // pred_fallthru
          _
        // Predicated region
        $region25: #{tpu_custom_call.1} parent=11 // pred_check
          %p252 = pneg %p132
        $region26: #{tpu_custom_call.1} parent=11 // pred_check_branch
          %254 = sbr.rel (%p252) target = $region28
        $region27: #{tpu_custom_call.1} parent=11 // pred_region
          %s256 = ssub.s32 16, 16
          %257 = vsyncadd [#allocation9], %s256
          %s259 = sshll.u32 [#allocation10], 4
          %s260 = int_to_ptr.vmem [resolvable:$true] %s259
          %262 = dma.hbm_to_vmem [thread:$0]  %s4, 16, %s260, [#allocation9]
        $region28: #{tpu_custom_call.1} parent=11 // pred_fallthru
          _
        // Predicated region
        $region29: #{tpu_custom_call.1} parent=11 // pred_check
          %p263 = pneg %p153
        $region30: #{tpu_custom_call.1} parent=11 // pred_check_branch
          %265 = sbr.rel (%p263) target = $region32
        $region31: #{tpu_custom_call.1} parent=11 // pred_region
          %s267 = ssub.s32 16, 16
          %268 = vsyncadd [#allocation12], %s267
          %s270 = sshll.u32 [#allocation11], 4
          %s271 = int_to_ptr.vmem [resolvable:$true] %s270
          %273 = dma.hbm_to_vmem [thread:$0]  %s5, 16, %s271, [#allocation12]
        $region32: #{tpu_custom_call.1} parent=11 // pred_fallthru
          _
        // Predicated region
        $region33: #{tpu_custom_call.1} parent=11 // pred_check
          %p274 = pneg %p174
        $region34: #{tpu_custom_call.1} parent=11 // pred_check_branch
          %276 = sbr.rel (%p274) target = $region36
        $region35: #{tpu_custom_call.1} parent=11 // pred_region
          %s278 = ssub.s32 16, 16
          %279 = vsyncadd [#allocation12], %s278
          %s281 = sshll.u32 [#allocation13], 4
          %s282 = int_to_ptr.vmem [resolvable:$true] %s281
          %284 = dma.hbm_to_vmem [thread:$0]  %s6, 16, %s282, [#allocation12]
        $region36: #{tpu_custom_call.1} parent=11 // pred_fallthru
          _
      $region12: #{tpu_custom_call.1} parent=5 // pred_fallthru
        _
      %p285 = scmp.lt.s32.totalorder %s22, 2
      // Predicated region
      $region37: #{tpu_custom_call.1} parent=5 // pred_check
        %p286 = pneg %p285
      $region38: #{tpu_custom_call.1} parent=5 // pred_check_branch
        %288 = sbr.rel (%p286) target = $region40
      $region39: #{tpu_custom_call.1} parent=5 // pred_region
        // Predicated region
        $region41: #{tpu_custom_call.1} parent=39 // pred_check
          %p289 = pneg %p42
        $region42: #{tpu_custom_call.1} parent=39 // pred_check_branch
          %291 = sbr.rel (%p289) target = $region44
        $region43: #{tpu_custom_call.1} parent=39 // pred_region
          %s292 = sand.u32 %s32, 1
          %s293 = scalar_lea.sflag [#allocation3], %s292
          %s294 = sand.u32 %s32, 1
          %s295 = smul.addr %s294, 8
          %s296 = scalar_lea.vmem [#allocation2], %s295
          %s298 = ssub.s32 128, 128
          %299 = vsyncadd %s293, %s298
          %s300 = smul.addr %s22, 128
          %s301 = scalar_lea.hbm %s0, %s300
          %s303 = sshll.u32 %s296, 4
          %s304 = int_to_ptr.vmem [resolvable:$true] %s303
          %306 = dma.hbm_to_vmem [thread:$0]  %s301, 128, %s304, %s293
        $region44: #{tpu_custom_call.1} parent=39 // pred_fallthru
          _
      $region40: #{tpu_custom_call.1} parent=5 // pred_fallthru
        _
      %p307 = scmp.le.s32.totalorder 1, %s22
      %p308 = scmp.lt.s32.totalorder %s22, 3
      %p309 = pnand %p307, %p308
      %p310 = pneg %p309
      // Predicated region
      $region45: #{tpu_custom_call.1} parent=5 // pred_check
        _
      $region46: #{tpu_custom_call.1} parent=5 // pred_check_branch
        %312 = sbr.rel (%p309) target = $region48
      $region47: #{tpu_custom_call.1} parent=5 // pred_region
        %s313 = ssub.s32 %s22, 1
        %s314 = sand.u32 %s35, 1
        %s315 = scalar_lea.sflag [#allocation3], %s314
        %s316 = sand.u32 %s35, 1
        %s317 = smul.addr %s316, 8
        %s318 = scalar_lea.vmem [#allocation2], %s317
        // Predicated region
        $region49: #{tpu_custom_call.1} parent=47 // pred_check
          %p319 = pneg %p48
        $region50: #{tpu_custom_call.1} parent=47 // pred_check_branch
          %321 = sbr.rel (%p319) target = $region52
        $region51: #{tpu_custom_call.1} parent=47 // pred_region
          %322 = dma.done %s315, 128
        $region52: #{tpu_custom_call.1} parent=47 // pred_fallthru
          _
        // Predicated region
        $region53: #{tpu_custom_call.1} parent=47 // pred_check
          %p323 = pneg %p69
        $region54: #{tpu_custom_call.1} parent=47 // pred_check_branch
          %325 = sbr.rel (%p323) target = $region56
        $region55: #{tpu_custom_call.1} parent=47 // pred_region
          %326 = dma.done [#allocation6], 512
        $region56: #{tpu_custom_call.1} parent=47 // pred_fallthru
          _
        // Predicated region
        $region57: #{tpu_custom_call.1} parent=47 // pred_check
          %p327 = pneg %p90
        $region58: #{tpu_custom_call.1} parent=47 // pred_check_branch
          %329 = sbr.rel (%p327) target = $region60
        $region59: #{tpu_custom_call.1} parent=47 // pred_region
          %330 = dma.done [#allocation6], 16
        $region60: #{tpu_custom_call.1} parent=47 // pred_fallthru
          _
        // Predicated region
        $region61: #{tpu_custom_call.1} parent=47 // pred_check
          %p331 = pneg %p111
        $region62: #{tpu_custom_call.1} parent=47 // pred_check_branch
          %333 = sbr.rel (%p331) target = $region64
        $region63: #{tpu_custom_call.1} parent=47 // pred_region
          %334 = dma.done [#allocation9], 2048
        $region64: #{tpu_custom_call.1} parent=47 // pred_fallthru
          _
        // Predicated region
        $region65: #{tpu_custom_call.1} parent=47 // pred_check
          %p335 = pneg %p132
        $region66: #{tpu_custom_call.1} parent=47 // pred_check_branch
          %337 = sbr.rel (%p335) target = $region68
        $region67: #{tpu_custom_call.1} parent=47 // pred_region
          %338 = dma.done [#allocation9], 16
        $region68: #{tpu_custom_call.1} parent=47 // pred_fallthru
          _
        // Predicated region
        $region69: #{tpu_custom_call.1} parent=47 // pred_check
          %p339 = pneg %p153
        $region70: #{tpu_custom_call.1} parent=47 // pred_check_branch
          %341 = sbr.rel (%p339) target = $region72
        $region71: #{tpu_custom_call.1} parent=47 // pred_region
          %342 = dma.done [#allocation12], 16
        $region72: #{tpu_custom_call.1} parent=47 // pred_fallthru
          _
        // Predicated region
        $region73: #{tpu_custom_call.1} parent=47 // pred_check
          %p343 = pneg %p174
        $region74: #{tpu_custom_call.1} parent=47 // pred_check_branch
          %345 = sbr.rel (%p343) target = $region76
        $region75: #{tpu_custom_call.1} parent=47 // pred_region
          %346 = dma.done [#allocation12], 16
        $region76: #{tpu_custom_call.1} parent=47 // pred_fallthru
          _
        %s347 = sand.u32 %s35, 1
        %s348 = scalar_lea.sflag [#allocation3], %s347
        %s349 = sand.u32 %s35, 1
        %s350 = smul.addr %s349, 8
        %s351 = scalar_lea.vmem [#allocation2], %s350
        %p352 = pneg %p48
        %p353 = pneg %p45
        %p354 = pneg %p69
        %p355 = pneg %p66
        %p356 = pneg %p90
        %p357 = pneg %p87
        %p358 = pneg %p111
        %p359 = pneg %p108
        %p360 = pneg %p132
        %p361 = pneg %p129
        %p362 = pneg %p153
        %p363 = pneg %p150
        %p364 = pneg %p174
        %p365 = pneg %p171
        %p366 = pneg %p200
        %p367 = pneg %p197
        %s368 = sand.u32 %s187, 1
        %s369 = scalar_lea.sflag [#allocation4], %s368
        %s370 = sand.u32 %s187, 1
        %s371 = smul.addr %s370, 8
        %s372 = scalar_lea.vmem [#allocation14], %s371
        %v373 = vld [vmem:[%s318] sm:$0xff]
        %v374 = vld [vmem:[#allocation5] sm:$0xff]
        %v375 = vld [vmem:[#allocation5 + $0x8] sm:$0xff]
        %v376 = vld [vmem:[#allocation5 + $0x10] sm:$0xff]
        %v377 = vld [vmem:[#allocation5 + $0x18] sm:$0xff]
        %v378 = vld [vmem:[#allocation7] sm:$0x1]
        %v380 = vlaneseq
        %v381 = vshrl.u32 %v380, 7
        %v382 = vsub.s32 0, %v381
        %v383 = vrot.slane %v378, %v382
        %vm385 = vcmask 261120
        %v387 = vsel %vm385, %v373, 0
        %389 = vmatprep.subr.mxu0 0.0
        %390 = vmatpush1.msra.mxu0 %v374
        %391 = vmatprep.subr.mxu0 0.0
        %392 = vmatpush1.msra.mxu0 %v375
        %393 = vmatprep.subr.mxu0 0.0
        %394 = vmatpush1.msra.mxu0 %v376
        %395 = vmatprep.subr.mxu0 0.0
        %396 = vmatpush1.msra.mxu0 %v377
        %397 = vmatprep.subr.mxu0 0.0
        %398 = vmatpush1.msra.mxu0 0.0
        %399 = vmatprep.subr.mxu0 0.0
        %400 = vmatpush1.msra.mxu0 0.0
        %401 = vmatprep.subr.mxu0 0.0
        %402 = vmatpush1.msra.mxu0 0.0
        %403 = vmatprep.subr.mxu0 0.0
        %404 = vmatpush1.msra.mxu0 0.0
        %405 = vmatprep.subr.mxu0 0.0
        %406 = vmatpush1.msra.mxu0 0.0
        %407 = vmatprep.subr.mxu0 0.0
        %408 = vmatpush1.msra.mxu0 0.0
        %409 = vmatprep.subr.mxu0 0.0
        %410 = vmatpush1.msra.mxu0 0.0
        %411 = vmatprep.subr.mxu0 0.0
        %412 = vmatpush1.msra.mxu0 0.0
        %413 = vmatprep.subr.mxu0 0.0
        %414 = vmatpush1.msra.mxu0 0.0
        %415 = vmatprep.subr.mxu0 0.0
        %416 = vmatpush1.msra.mxu0 0.0
        %417 = vmatprep.subr.mxu0 0.0
        %418 = vmatpush1.msra.mxu0 0.0
        %419 = vmatprep.subr.mxu0 0.0
        %420 = vmatpush1.msra.mxu0 0.0
        %421 = vmatprep.subr.mxu0 0.0
        %422 = vmatpush1.msra.mxu0 0.0
        %423 = vmatprep.subr.mxu0 0.0
        %424 = vmatpush1.msra.mxu0 0.0
        %425 = vmatprep.subr.mxu0 0.0
        %426 = vmatpush1.msra.mxu0 0.0
        %427 = vmatprep.subr.mxu0 0.0
        %428 = vmatpush1.msra.mxu0 0.0
        %429 = vmatprep.subr.mxu0 0.0
        %430 = vmatpush1.msra.mxu0 0.0
        %431 = vmatprep.subr.mxu0 0.0
        %432 = vmatpush1.msra.mxu0 0.0
        %433 = vmatprep.subr.mxu0 0.0
        %434 = vmatpush1.msra.mxu0 0.0
        %435 = vmatprep.subr.mxu0 0.0
        %436 = vmatpush1.msra.mxu0 0.0
        %437 = vmatprep.subr.mxu0 0.0
        %438 = vmatpush1.msra.mxu0 0.0
        %439 = vmatprep.subr.mxu0 0.0
        %440 = vmatpush1.msra.mxu0 0.0
        %441 = vmatprep.subr.mxu0 0.0
        %442 = vmatpush1.msra.mxu0 0.0
        %443 = vmatprep.subr.mxu0 0.0
        %444 = vmatpush1.msra.mxu0 0.0
        %445 = vmatprep.subr.mxu0 0.0
        %446 = vmatpush1.msra.mxu0 0.0
        %447 = vmatprep.subr.mxu0 0.0
        %448 = vmatpush1.msra.mxu0 0.0
        %449 = vmatprep.subr.mxu0 0.0
        %450 = vmatpush1.msra.mxu0 0.0
        %451 = vmatprep.subr.mxu0 0.0
        %452 = vmatpush1.msra.mxu0 0.0
        %453 = vmatprep.mubr.f32.mxu0 0.0
        %454 = vmatmul.mubr.f32.gmra.mrb[0].mxu0 %v387
        %v455 = vpop.f32.mrb[0].mxu0
        %v456 = vadd.f32 %v383, %v455
        %v457 = vpop.f32.mrb[0].mxu0
        %458 = vdwg.mxu0
        %v459 = vmul.f32 %v456, 0.5
        %v460 = vmul.f32 %v456, 0.70710677
        %vm461 = vcmp.ge.f32.partialorder %v460, 0.0
        %v462 = vsel %vm461, 1.0, -1.0
        %v463 = vand.u32 2147483647, %v460
        %v464 = vmul.f32 %v463, 0.3275911
        %v465 = vadd.f32 %v464, 1.0
        %v466 = vrcp.pop %v465
        %v467 = vmul.f32 1.0, %v466
        %v468 = vmul.f32 %v467, 1.0614054
        %v469 = vadd.f32 %v468, -1.4531521
        %v470 = vmul.f32 %v469, %v467
        %v471 = vadd.f32 %v470, 1.4214138
        %v472 = vmul.f32 %v471, %v467
        %v473 = vadd.f32 %v472, -0.28449672
        %v474 = vmul.f32 %v473, %v467
        %v475 = vadd.f32 %v474, 0.2548296
        %v476 = vmul.f32 %v475, %v467
        %v477 = vsub.f32 0.0, %v463
        %v478 = vmul.f32 %v477, %v463
        %v479 = vmul.f32 %v478, 1.442695
        %v480 = vpow.pop %v479
        %v481 = vmul.f32 %v476, %v480
        %v482 = vsub.f32 1.0, %v481
        %v483 = vmul.f32 %v462, %v482
        %v484 = vadd.f32 %v483, 1.0
        %v485 = vmul.f32 %v459, %v484
        %v486 = vld [vmem:[#allocation8] sm:$0xff]
        %v487 = vld [vmem:[#allocation8 + $0x8] sm:$0xff]
        %v488 = vld [vmem:[#allocation8 + $0x10] sm:$0xff]
        %v489 = vld [vmem:[#allocation8 + $0x18] sm:$0xff]
        %v490 = vld [vmem:[#allocation8 + $0x20] sm:$0xff]
        %v491 = vld [vmem:[#allocation8 + $0x28] sm:$0xff]
        %v492 = vld [vmem:[#allocation8 + $0x30] sm:$0xff]
        %v493 = vld [vmem:[#allocation8 + $0x38] sm:$0xff]
        %v494 = vld [vmem:[#allocation8 + $0x40] sm:$0xff]
        %v495 = vld [vmem:[#allocation8 + $0x48] sm:$0xff]
        %v496 = vld [vmem:[#allocation8 + $0x50] sm:$0xff]
        %v497 = vld [vmem:[#allocation8 + $0x58] sm:$0xff]
        %v498 = vld [vmem:[#allocation8 + $0x60] sm:$0xff]
        %v499 = vld [vmem:[#allocation8 + $0x68] sm:$0xff]
        %v500 = vld [vmem:[#allocation8 + $0x70] sm:$0xff]
        %v501 = vld [vmem:[#allocation8 + $0x78] sm:$0xff]
        %v502 = vld [vmem:[#allocation10] sm:$0x1]
        %v504 = vlaneseq
        %v505 = vshrl.u32 %v504, 7
        %v506 = vsub.s32 0, %v505
        %v507 = vrot.slane %v502, %v506
        %509 = vmatprep.subr.mxu0 0.0
        %510 = vmatpush1.msra.mxu0 %v486
        %511 = vmatprep.subr.mxu0 0.0
        %512 = vmatpush1.msra.mxu0 %v487
        %513 = vmatprep.subr.mxu0 0.0
        %514 = vmatpush1.msra.mxu0 %v488
        %515 = vmatprep.subr.mxu0 0.0
        %516 = vmatpush1.msra.mxu0 %v489
        %517 = vmatprep.subr.mxu0 0.0
        %518 = vmatpush1.msra.mxu0 %v490
        %519 = vmatprep.subr.mxu0 0.0
        %520 = vmatpush1.msra.mxu0 %v491
        %521 = vmatprep.subr.mxu0 0.0
        %522 = vmatpush1.msra.mxu0 %v492
        %523 = vmatprep.subr.mxu0 0.0
        %524 = vmatpush1.msra.mxu0 %v493
        %525 = vmatprep.subr.mxu0 0.0
        %526 = vmatpush1.msra.mxu0 %v494
        %527 = vmatprep.subr.mxu0 0.0
        %528 = vmatpush1.msra.mxu0 %v495
        %529 = vmatprep.subr.mxu0 0.0
        %530 = vmatpush1.msra.mxu0 %v496
        %531 = vmatprep.subr.mxu0 0.0
        %532 = vmatpush1.msra.mxu0 %v497
        %533 = vmatprep.subr.mxu0 0.0
        %534 = vmatpush1.msra.mxu0 %v498
        %535 = vmatprep.subr.mxu0 0.0
        %536 = vmatpush1.msra.mxu0 %v499
        %537 = vmatprep.subr.mxu0 0.0
        %538 = vmatpush1.msra.mxu0 %v500
        %539 = vmatprep.subr.mxu0 0.0
        %540 = vmatpush1.msra.mxu0 %v501
        %541 = vmatprep.subr.mxu0 0.0
        %542 = vmatpush1.msra.mxu0 0.0
        %543 = vmatprep.subr.mxu0 0.0
        %544 = vmatpush1.msra.mxu0 0.0
        %545 = vmatprep.subr.mxu0 0.0
        %546 = vmatpush1.msra.mxu0 0.0
        %547 = vmatprep.subr.mxu0 0.0
        %548 = vmatpush1.msra.mxu0 0.0
        %549 = vmatprep.subr.mxu0 0.0
        %550 = vmatpush1.msra.mxu0 0.0
        %551 = vmatprep.subr.mxu0 0.0
        %552 = vmatpush1.msra.mxu0 0.0
        %553 = vmatprep.subr.mxu0 0.0
        %554 = vmatpush1.msra.mxu0 0.0
        %555 = vmatprep.subr.mxu0 0.0
        %556 = vmatpush1.msra.mxu0 0.0
        %557 = vmatprep.subr.mxu0 0.0
        %558 = vmatpush1.msra.mxu0 0.0
        %559 = vmatprep.subr.mxu0 0.0
        %560 = vmatpush1.msra.mxu0 0.0
        %561 = vmatprep.subr.mxu0 0.0
        %562 = vmatpush1.msra.mxu0 0.0
        %563 = vmatprep.subr.mxu0 0.0
        %564 = vmatpush1.msra.mxu0 0.0
        %565 = vmatprep.subr.mxu0 0.0
        %566 = vmatpush1.msra.mxu0 0.0
        %567 = vmatprep.subr.mxu0 0.0
        %568 = vmatpush1.msra.mxu0 0.0
        %569 = vmatprep.subr.mxu0 0.0
        %570 = vmatpush1.msra.mxu0 0.0
        %571 = vmatprep.subr.mxu0 0.0
        %572 = vmatpush1.msra.mxu0 0.0
        %573 = vmatprep.mubr.f32.mxu0 0.0
        %574 = vmatmul.mubr.f32.gmra.mrb[0].mxu0 %v485
        %v575 = vpop.f32.mrb[0].mxu0
        %v576 = vadd.f32 %v507, %v575
        %v577 = vpop.f32.mrb[0].mxu0
        %578 = vdwg.mxu0
        %v579 = vadd.f32 %v576, %v373
        %v580 = vsel %vm385, %v579, 0.0
        %581 = vadd.xlane.f32.xlu0 %v580
        %v582 = vpop.xlane.xlu0 %581
        %v583 = vrcp.pop 32.0
        %v584 = vmul.f32 %v582, %v583
        %v585 = vsub.f32 %v579, %v584
        %v586 = vmul.f32 %v585, %v585
        %v587 = vsel %vm385, %v586, 0.0
        %588 = vadd.xlane.f32.xlu0 %v587
        %v589 = vpop.xlane.xlu0 %588
        %v590 = vmul.f32 %v589, %v583
        %v591 = vadd.f32 %v590, 1e-12
        %v592 = vrsqrt.pop %v591
        %v593 = vmul.f32 %v585, %v592
        %v594 = vld [vmem:[#allocation11] sm:$0x1]
        %v596 = vlaneseq
        %v597 = vshrl.u32 %v596, 7
        %v598 = vsub.s32 0, %v597
        %v599 = vrot.slane %v594, %v598
        %v601 = vmul.f32 %v599, %v593
        %v602 = vld [vmem:[#allocation13] sm:$0x1]
        %v604 = vlaneseq
        %v605 = vshrl.u32 %v604, 7
        %v606 = vsub.s32 0, %v605
        %v607 = vrot.slane %v602, %v606
        %v609 = vadd.f32 %v601, %v607
        %610 = vst.msk [vmem:[%s372] sm:$0xff] %vm385, %v609
        %s611 = sand.u32 %s187, 1
        %s612 = scalar_lea.sflag [#allocation4], %s611
        %s613 = sand.u32 %s187, 1
        %s614 = smul.addr %s613, 8
        %s615 = scalar_lea.vmem [#allocation14], %s614
        // Predicated region
        $region77: #{tpu_custom_call.1} parent=47 // pred_check
          %p616 = pneg %p197
        $region78: #{tpu_custom_call.1} parent=47 // pred_check_branch
          %618 = sbr.rel (%p616) target = $region80
        $region79: #{tpu_custom_call.1} parent=47 // pred_region
          %s620 = ssub.s32 128, 128
          %621 = vsyncadd %s612, %s620
          %s622 = smul.addr %s27, 128
          %s623 = scalar_lea.hbm %s7, %s622
          %s625 = sshll.u32 %s615, 4
          %s626 = int_to_ptr.vmem [resolvable:$true] %s625
          %628 = dma.vmem_to_hbm [thread:$0]  %s626, 128, %s623, %s612
        $region80: #{tpu_custom_call.1} parent=47 // pred_fallthru
          _
      $region48: #{tpu_custom_call.1} parent=5 // pred_fallthru
        _
      %p629 = scmp.le.s32.totalorder 2, %s22
      // Predicated region
      $region81: #{tpu_custom_call.1} parent=5 // pred_check
        %p630 = pneg %p629
      $region82: #{tpu_custom_call.1} parent=5 // pred_check_branch
        %632 = sbr.rel (%p630) target = $region84
      $region83: #{tpu_custom_call.1} parent=5 // pred_region
        %s633 = ssub.s32 %s22, 2
        // Predicated region
        $region85: #{tpu_custom_call.1} parent=83 // pred_check
          %p634 = pneg %p203
        $region86: #{tpu_custom_call.1} parent=83 // pred_check_branch
          %636 = sbr.rel (%p634) target = $region88
        $region87: #{tpu_custom_call.1} parent=83 // pred_region
          %s637 = sand.u32 %s188, 1
          %s638 = scalar_lea.sflag [#allocation4], %s637
          %s639 = sand.u32 %s188, 1
          %s640 = smul.addr %s639, 8
          %s641 = scalar_lea.vmem [#allocation14], %s640
          %642 = dma.done %s638, 128
        $region88: #{tpu_custom_call.1} parent=83 // pred_fallthru
          _
      $region84: #{tpu_custom_call.1} parent=5 // pred_fallthru
        _
    $region6: #{tpu_custom_call.1} parent=1 // loop_footer
      %s26 = sadd.s32 1, %s22
    $region7: #{tpu_custom_call.1} parent=1 // loop_footer_branch
      %21 = sbr.rel target = $region3
    $region8: #{tpu_custom_call.1} parent=1 // loop_exit
      _
    %643 = vsyncpa [#allocation3], 1
    %s644 = scalar_lea.sflag [#allocation3], 1
    %645 = vsyncpa %s644, 1
    %646 = vsyncpa [#allocation6], 1
    %647 = vsyncpa [#allocation9], 1
    %648 = vsyncpa [#allocation12], 1
    %649 = vsyncpa [#allocation4], 1
    %s650 = scalar_lea.sflag [#allocation4], 1
    %651 = vsyncpa %s650, 1

</llo_original>
